<compile_context>
chip_gen: v7x
topology: tpu7x:2x2x1
jax: 0.10.0
libtpu: 0.0.40
codegen_flags: <defaults>
</compile_context>

<pallas_src>
import functools

import jax
import jax.numpy as jnp
from jax import lax
from jax.experimental import pallas as pl
from jax.experimental.pallas import tpu as pltpu


def _pack_rows(mats, width, dtype=jnp.float32):
    """Concatenate [r_i, width] matrices along rows; every block start is 8-row aligned."""
    blocks, offsets, row = [], [], 0
    for m in mats:
        offsets.append(row)
        blocks.append(m.astype(dtype))
        row += m.shape[0]
        pad = (-m.shape[0]) % 8
        if pad:
            blocks.append(jnp.zeros((pad, width), dtype))
            row += pad
    return jnp.concatenate(blocks, axis=0), offsets


def _decoder_kernel(ids_ref, ctxp_ref, h0_ref, wpack_ref, bpack_ref,
                    dec_out_ref, hn_ref, *,
                    S, B, V, H, L, off_wih, off_whh):
    # ids_ref:  [S, B] int32            ctxp_ref: [S*B, V+2H]  (ctx in lanes V..V+2H-1)
    # h0_ref:   [L, B, H]               wpack_ref: [R, H]      bpack_ref: [L, 1, H]
    # dec_out_ref: [S, B, H]            hn_ref: [L, B, H]
    W0 = V + 2 * H

    # ---- Fused (embedding one-hot | context) @ pre-folded layer-0 weight: ONE MXU matmul.
    # One-hot built at full W0 width (ids < V, so lanes >= V never match -> zeros there);
    # out-of-range ids silently map to a zero row (unlike torch.nn.Embedding, which errors).
    ids = ids_ref[...]                                                  # [S, B] int32
    iota = lax.broadcasted_iota(jnp.int32, (S, B, W0), 2)
    onehot = (ids[:, :, None] == iota).astype(jnp.float32).reshape(S * B, W0)
    fused_in = onehot + ctxp_ref[...]                                   # lane-aligned merge
    x0 = jnp.dot(fused_in, wpack_ref[0:W0, :],
                 preferred_element_type=jnp.float32) + bpack_ref[0]     # [S*B, H]
    layer_x = x0.reshape(S, B, H)                                       # value: stays in vregs

    layer_seq = None
    for l in range(L):                                                  # L is static
        if l > 0:
            # Input-to-hidden for ALL timesteps of layer l in one 2-D MXU matmul,
            # consuming Wih in its stored [out, in] layout (trans_b contraction).
            o = off_wih[l - 1]
            xw = lax.dot_general(layer_seq.reshape(S * B, H),
                                 wpack_ref[o:o + H, :],
                                 (((1,), (1,)), ((), ())),
                                 preferred_element_type=jnp.float32)
            layer_x = (xw + bpack_ref[l]).reshape(S, B, H)

        o = off_whh[l]
        whh_l = wpack_ref[o:o + H, :]                                   # [H, H], loaded once

        h = h0_ref[l]                                                   # [B, H]
        outs = []
        for t in range(S):      # static unroll; only the h_{t-1} @ Whh^T chain is serial
            rec = lax.dot_general(h, whh_l, (((1,), (1,)), ((), ())),
                                  preferred_element_type=jnp.float32)
            h = jnp.tanh(layer_x[t] + rec)                              # static slice of a value
            outs.append(h)                                              # kept in vregs
        hn_ref[l] = h                                                   # L tiny stores, off-chain
        layer_seq = jnp.stack(outs, axis=0)                             # [S, B, H] in vregs

    dec_out_ref[...] = layer_seq                                        # single bulk store


def decoder_forward(ids, context, state, emb_w, wc, bc, wih, whh, bih, bhh):
    S, B = ids.shape
    V, H = emb_w.shape
    L = state.shape[0]
    W0 = V + 2 * H
    hi = lax.Precision.HIGHEST        # exact f32 host-side folds

    # Pre-fold the layer-0 input-to-hidden weight into the embedding/context weights:
    #   x0_pre = onehot @ (E @ Wih0^T) + ctx @ (Wc^T @ Wih0^T) + (bc @ Wih0^T + bih0 + bhh0)
    w0 = jnp.concatenate([jnp.dot(emb_w, wih[0].T, precision=hi),       # [V,  H]
                          jnp.dot(wc.T, wih[0].T, precision=hi)],       # [2H, H]
                         axis=0)                                        # [V+2H, H], stored [in,out]
    b0 = jnp.dot(bc, wih[0].T, precision=hi) + bih[0] + bhh[0]          # [H]

    # Pack every remaining weight matrix into ONE [R, H] array and all per-layer combined
    # biases into one [L, 1, H] array (fewer tiny input DMAs; static slices in-kernel are free).
    mats = [w0] + [wih[l] for l in range(1, L)] + [whh[l] for l in range(L)]
    w_pack, offs = _pack_rows(mats, H)
    off_wih = tuple(offs[1:L])                      # layers 1..L-1
    off_whh = tuple(offs[L:])                       # layers 0..L-1
    b_pack = jnp.stack([b0] + [bih[l] + bhh[l] for l in range(1, L)],
                       axis=0).reshape(L, 1, H)

    # Place the context in lanes [V, V+2H) of a W0-wide slab so the kernel can fuse
    # (one-hot | context) with a single lane-aligned add (no in-kernel lane concat).
    ctx_pad = jnp.pad(context.astype(jnp.float32).reshape(S * B, 2 * H), ((0, 0), (V, 0)))

    args = (ids.astype(jnp.int32), ctx_pad, state.astype(jnp.float32), w_pack, b_pack)

    flops = 2 * S * B * H * W0 + (2 * L - 1) * 2 * S * B * H * H
    transcendentals = L * S * B * H
    out_bytes = (S * B * H + L * B * H) * 4
    in_bytes = sum(int(a.size) * a.dtype.itemsize for a in args)
    cost = pl.CostEstimate(flops=flops, transcendentals=transcendentals,
                           bytes_accessed=in_bytes + out_bytes)

    vmem = pl.BlockSpec(memory_space=pltpu.MemorySpace.VMEM)
    kernel = functools.partial(_decoder_kernel, S=S, B=B, V=V, H=H, L=L,
                               off_wih=off_wih, off_whh=off_whh)
    dec_out, h_n = pl.pallas_call(
        kernel,
        out_shape=(jax.ShapeDtypeStruct((S, B, H), jnp.float32),
                   jax.ShapeDtypeStruct((L, B, H), jnp.float32)),
        in_specs=[vmem] * len(args),
        out_specs=(vmem, vmem),
        cost_estimate=cost,
    )(*args)
    return dec_out, h_n


def decoder_reference(ids, context, state, emb_w, wc, bc, wih, whh, bih, bhh):
    S, B = ids.shape
    L, _, H = state.shape
    x = emb_w[ids] + (jnp.einsum('sbk,hk->sbh', context, wc) + bc)
    layer_in = x
    finals = []
    for l in range(L):
        h = state[l]
        outs = []
        for t in range(S):
            h = jnp.tanh(layer_in[t] @ wih[l].T + bih[l] + h @ whh[l].T + bhh[l])
            outs.append(h)
        layer_in = jnp.stack(outs, axis=0)
        finals.append(h)
    return layer_in, jnp.stack(finals, axis=0)


if __name__ == "__main__":
    # Small shapes consistent with the module: seq S=8, batch B=8, hidden H=32, char vocab V=64.
    S, B, H, V = 8, 8, 32, 64

    for L in (1, 2):
        key = jax.random.PRNGKey(0)
        ks = jax.random.split(key, 10)
        ids = jax.random.randint(ks[0], (S, B), 0, V, dtype=jnp.int32)
        context = jax.random.normal(ks[1], (S, B, 2 * H), dtype=jnp.float32)
        state = jax.random.normal(ks[2], (L, B, H), dtype=jnp.float32) * 0.1
        emb_w = jax.random.normal(ks[3], (V, H), dtype=jnp.float32) * 0.1
        wc = jax.random.normal(ks[4], (H, 2 * H), dtype=jnp.float32) * 0.1
        bc = jax.random.normal(ks[5], (H,), dtype=jnp.float32) * 0.1
        wih = jax.random.normal(ks[6], (L, H, H), dtype=jnp.float32) * 0.1
        whh = jax.random.normal(ks[7], (L, H, H), dtype=jnp.float32) * 0.1
        bih = jax.random.normal(ks[8], (L, H), dtype=jnp.float32) * 0.1
        bhh = jax.random.normal(ks[9], (L, H), dtype=jnp.float32) * 0.1

        dec_out, h_n = decoder_forward(ids, context, state, emb_w, wc, bc,
                                       wih, whh, bih, bhh)
        dec_out = jax.block_until_ready(dec_out)
        h_n = jax.block_until_ready(h_n)

        ref_out, ref_h = decoder_reference(ids, context, state, emb_w, wc, bc,
                                           wih, whh, bih, bhh)
        assert dec_out.shape == (S, B, H) and h_n.shape == (L, B, H)
        # Pre-folded layer-0 weights change the f32 summation order slightly -> 2e-4 tolerance.
        assert jnp.allclose(dec_out, ref_out, atol=2e-4, rtol=2e-4), f"dec_out mismatch (L={L})"
        assert jnp.allclose(h_n, ref_h, atol=2e-4, rtol=2e-4), f"final state mismatch (L={L})"

    print("KERNEL_OK")
</pallas_src>

<mosaic_0001>
module attributes {stable_mosaic.version = 11 : i64} {
  func.func @_decoder_kernel(%arg0: memref<8x8xi32, #tpu.memory_space<vmem>>, %arg1: memref<64x128xf32, #tpu.memory_space<vmem>>, %arg2: memref<1x8x32xf32, #tpu.memory_space<vmem>>, %arg3: memref<160x32xf32, #tpu.memory_space<vmem>>, %arg4: memref<1x1x32xf32, #tpu.memory_space<vmem>>, %arg5: memref<8x8x32xf32, #tpu.memory_space<vmem>>, %arg6: memref<1x8x32xf32, #tpu.memory_space<vmem>>) attributes {dimension_semantics = [], scalar_prefetch = 0 : i64, scratch_operands = 0 : i64, tpu.core_type = #tpu.core_type<tc>} {
    %c0 = arith.constant 0 : index
    %c0_0 = arith.constant 0 : index
    %0 = vector.load %arg0[%c0, %c0_0] : memref<8x8xi32, #tpu.memory_space<vmem>>, vector<8x8xi32>
    %1 = tpu.iota {dimensions = array<i32: 2>} : vector<8x8x128xi32>
    %2 = vector.shape_cast %0 : vector<8x8xi32> to vector<8x8x1xi32>
    %3 = vector.broadcast %2 : vector<8x8x1xi32> to vector<8x8x128xi32>
    %4 = arith.cmpi eq, %3, %1 : vector<8x8x128xi32>
    %5 = arith.extui %4 : vector<8x8x128xi1> to vector<8x8x128xi32>
    %6 = arith.sitofp %5 : vector<8x8x128xi32> to vector<8x8x128xf32>
    %7 = vector.shape_cast %6 : vector<8x8x128xf32> to vector<64x128xf32>
    %c0_1 = arith.constant 0 : index
    %c0_2 = arith.constant 0 : index
    %8 = vector.load %arg1[%c0_1, %c0_2] : memref<64x128xf32, #tpu.memory_space<vmem>>, vector<64x128xf32>
    %9 = arith.addf %7, %8 : vector<64x128xf32>
    %c0_3 = arith.constant 0 : index
    %c0_4 = arith.constant 0 : index
    %10 = vector.load %arg3[%c0_3, %c0_4] : memref<160x32xf32, #tpu.memory_space<vmem>>, vector<128x32xf32>
    %cst = arith.constant dense<0.000000e+00> : vector<64x32xf32>
    %11 = tpu.matmul %9, %10, %cst {dimension_numbers = #tpu.dot_dimension_numbers<[1], [0], [0], [1], [0, 0, 1, 1], [], []>} : vector<64x128xf32>, vector<128x32xf32>, vector<64x32xf32> -> vector<64x32xf32>
    %c0_5 = arith.constant 0 : index
    %c0_6 = arith.constant 0 : index
    %c0_7 = arith.constant 0 : index
    %12 = vector.load %arg4[%c0_5, %c0_6, %c0_7] : memref<1x1x32xf32, #tpu.memory_space<vmem>>, vector<1x1x32xf32>
    %13 = vector.shape_cast %12 : vector<1x1x32xf32> to vector<1x32xf32>
    %14 = vector.broadcast %13 : vector<1x32xf32> to vector<64x32xf32>
    %15 = arith.addf %11, %14 : vector<64x32xf32>
    %16 = vector.shape_cast %15 : vector<64x32xf32> to vector<8x8x32xf32>
    %c128 = arith.constant 128 : index
    %c0_8 = arith.constant 0 : index
    %17 = vector.load %arg3[%c128, %c0_8] : memref<160x32xf32, #tpu.memory_space<vmem>>, vector<32x32xf32>
    %c0_9 = arith.constant 0 : index
    %c0_10 = arith.constant 0 : index
    %c0_11 = arith.constant 0 : index
    %18 = vector.load %arg2[%c0_9, %c0_10, %c0_11] : memref<1x8x32xf32, #tpu.memory_space<vmem>>, vector<1x8x32xf32>
    %19 = vector.shape_cast %18 : vector<1x8x32xf32> to vector<8x32xf32>
    %cst_12 = arith.constant dense<0.000000e+00> : vector<8x32xf32>
    %20 = tpu.matmul %19, %17, %cst_12 {dimension_numbers = #tpu.dot_dimension_numbers<[1], [1], [0], [0], [0, 0, 1, 0], [], []>} : vector<8x32xf32>, vector<32x32xf32>, vector<8x32xf32> -> vector<8x32xf32>
    %21 = vector.extract_strided_slice %16 {offsets = [0, 0, 0], sizes = [1, 8, 32], strides = [1, 1, 1]} : vector<8x8x32xf32> to vector<1x8x32xf32>
    %22 = vector.shape_cast %21 : vector<1x8x32xf32> to vector<8x32xf32>
    %23 = arith.addf %22, %20 : vector<8x32xf32>
    %24 = math.tanh %23 : vector<8x32xf32>
    %cst_13 = arith.constant dense<0.000000e+00> : vector<8x32xf32>
    %25 = tpu.matmul %24, %17, %cst_13 {dimension_numbers = #tpu.dot_dimension_numbers<[1], [1], [0], [0], [0, 0, 1, 0], [], []>} : vector<8x32xf32>, vector<32x32xf32>, vector<8x32xf32> -> vector<8x32xf32>
    %26 = vector.extract_strided_slice %16 {offsets = [1, 0, 0], sizes = [1, 8, 32], strides = [1, 1, 1]} : vector<8x8x32xf32> to vector<1x8x32xf32>
    %27 = vector.shape_cast %26 : vector<1x8x32xf32> to vector<8x32xf32>
    %28 = arith.addf %27, %25 : vector<8x32xf32>
    %29 = math.tanh %28 : vector<8x32xf32>
    %cst_14 = arith.constant dense<0.000000e+00> : vector<8x32xf32>
    %30 = tpu.matmul %29, %17, %cst_14 {dimension_numbers = #tpu.dot_dimension_numbers<[1], [1], [0], [0], [0, 0, 1, 0], [], []>} : vector<8x32xf32>, vector<32x32xf32>, vector<8x32xf32> -> vector<8x32xf32>
    %31 = vector.extract_strided_slice %16 {offsets = [2, 0, 0], sizes = [1, 8, 32], strides = [1, 1, 1]} : vector<8x8x32xf32> to vector<1x8x32xf32>
    %32 = vector.shape_cast %31 : vector<1x8x32xf32> to vector<8x32xf32>
    %33 = arith.addf %32, %30 : vector<8x32xf32>
    %34 = math.tanh %33 : vector<8x32xf32>
    %cst_15 = arith.constant dense<0.000000e+00> : vector<8x32xf32>
    %35 = tpu.matmul %34, %17, %cst_15 {dimension_numbers = #tpu.dot_dimension_numbers<[1], [1], [0], [0], [0, 0, 1, 0], [], []>} : vector<8x32xf32>, vector<32x32xf32>, vector<8x32xf32> -> vector<8x32xf32>
    %36 = vector.extract_strided_slice %16 {offsets = [3, 0, 0], sizes = [1, 8, 32], strides = [1, 1, 1]} : vector<8x8x32xf32> to vector<1x8x32xf32>
    %37 = vector.shape_cast %36 : vector<1x8x32xf32> to vector<8x32xf32>
    %38 = arith.addf %37, %35 : vector<8x32xf32>
    %39 = math.tanh %38 : vector<8x32xf32>
    %cst_16 = arith.constant dense<0.000000e+00> : vector<8x32xf32>
    %40 = tpu.matmul %39, %17, %cst_16 {dimension_numbers = #tpu.dot_dimension_numbers<[1], [1], [0], [0], [0, 0, 1, 0], [], []>} : vector<8x32xf32>, vector<32x32xf32>, vector<8x32xf32> -> vector<8x32xf32>
    %41 = vector.extract_strided_slice %16 {offsets = [4, 0, 0], sizes = [1, 8, 32], strides = [1, 1, 1]} : vector<8x8x32xf32> to vector<1x8x32xf32>
    %42 = vector.shape_cast %41 : vector<1x8x32xf32> to vector<8x32xf32>
    %43 = arith.addf %42, %40 : vector<8x32xf32>
    %44 = math.tanh %43 : vector<8x32xf32>
    %cst_17 = arith.constant dense<0.000000e+00> : vector<8x32xf32>
    %45 = tpu.matmul %44, %17, %cst_17 {dimension_numbers = #tpu.dot_dimension_numbers<[1], [1], [0], [0], [0, 0, 1, 0], [], []>} : vector<8x32xf32>, vector<32x32xf32>, vector<8x32xf32> -> vector<8x32xf32>
    %46 = vector.extract_strided_slice %16 {offsets = [5, 0, 0], sizes = [1, 8, 32], strides = [1, 1, 1]} : vector<8x8x32xf32> to vector<1x8x32xf32>
    %47 = vector.shape_cast %46 : vector<1x8x32xf32> to vector<8x32xf32>
    %48 = arith.addf %47, %45 : vector<8x32xf32>
    %49 = math.tanh %48 : vector<8x32xf32>
    %cst_18 = arith.constant dense<0.000000e+00> : vector<8x32xf32>
    %50 = tpu.matmul %49, %17, %cst_18 {dimension_numbers = #tpu.dot_dimension_numbers<[1], [1], [0], [0], [0, 0, 1, 0], [], []>} : vector<8x32xf32>, vector<32x32xf32>, vector<8x32xf32> -> vector<8x32xf32>
    %51 = vector.extract_strided_slice %16 {offsets = [6, 0, 0], sizes = [1, 8, 32], strides = [1, 1, 1]} : vector<8x8x32xf32> to vector<1x8x32xf32>
    %52 = vector.shape_cast %51 : vector<1x8x32xf32> to vector<8x32xf32>
    %53 = arith.addf %52, %50 : vector<8x32xf32>
    %54 = math.tanh %53 : vector<8x32xf32>
    %cst_19 = arith.constant dense<0.000000e+00> : vector<8x32xf32>
    %55 = tpu.matmul %54, %17, %cst_19 {dimension_numbers = #tpu.dot_dimension_numbers<[1], [1], [0], [0], [0, 0, 1, 0], [], []>} : vector<8x32xf32>, vector<32x32xf32>, vector<8x32xf32> -> vector<8x32xf32>
    %56 = vector.extract_strided_slice %16 {offsets = [7, 0, 0], sizes = [1, 8, 32], strides = [1, 1, 1]} : vector<8x8x32xf32> to vector<1x8x32xf32>
    %57 = vector.shape_cast %56 : vector<1x8x32xf32> to vector<8x32xf32>
    %58 = arith.addf %57, %55 : vector<8x32xf32>
    %59 = math.tanh %58 : vector<8x32xf32>
    %c0_20 = arith.constant 0 : index
    %c0_21 = arith.constant 0 : index
    %c0_22 = arith.constant 0 : index
    %60 = vector.load %arg6[%c0_20, %c0_21, %c0_22] : memref<1x8x32xf32, #tpu.memory_space<vmem>>, vector<1x8x32xf32>
    %61 = vector.shape_cast %60 : vector<1x8x32xf32> to vector<8x32xf32>
    %62 = vector.shape_cast %59 : vector<8x32xf32> to vector<1x8x32xf32>
    tpu.vector_store %arg6[%c0_20, %c0_21, %c0_22], %62 {strides = array<i32>} : memref<1x8x32xf32, #tpu.memory_space<vmem>>, vector<1x8x32xf32>,
    %63 = vector.shape_cast %24 : vector<8x32xf32> to vector<1x8x32xf32>
    %64 = vector.shape_cast %29 : vector<8x32xf32> to vector<1x8x32xf32>
    %65 = vector.shape_cast %34 : vector<8x32xf32> to vector<1x8x32xf32>
    %66 = vector.shape_cast %39 : vector<8x32xf32> to vector<1x8x32xf32>
    %67 = vector.shape_cast %44 : vector<8x32xf32> to vector<1x8x32xf32>
    %68 = vector.shape_cast %49 : vector<8x32xf32> to vector<1x8x32xf32>
    %69 = vector.shape_cast %54 : vector<8x32xf32> to vector<1x8x32xf32>
    %70 = vector.shape_cast %59 : vector<8x32xf32> to vector<1x8x32xf32>
    %71 = tpu.concatenate %63, %64, %65, %66, %67, %68, %69, %70 in 0 : vector<1x8x32xf32>, vector<1x8x32xf32>, vector<1x8x32xf32>, vector<1x8x32xf32>, vector<1x8x32xf32>, vector<1x8x32xf32>, vector<1x8x32xf32>, vector<1x8x32xf32> -> vector<8x8x32xf32>
    %c0_23 = arith.constant 0 : index
    %c0_24 = arith.constant 0 : index
    %c0_25 = arith.constant 0 : index
    %72 = vector.load %arg5[%c0_23, %c0_24, %c0_25] : memref<8x8x32xf32, #tpu.memory_space<vmem>>, vector<8x8x32xf32>
    tpu.vector_store %arg5[%c0_23, %c0_24, %c0_25], %71 {strides = array<i32>} : memref<8x8x32xf32, #tpu.memory_space<vmem>>, vector<8x8x32xf32>,
    return
  }
}

</mosaic_0001>

<llo_original>
// kernel: tpu_custom_call.1
$region0: #{tpu_custom_call.1}
  #allocation0 [shape = 'u32[]', space=smem, size = 0x4, offset = 0x4, fixed_abs, tag = 'smem constant byte address 0x4 - core index']
  #allocation1 [shape = 'u32[144,128]{1,0:T(1,128)}', space=vmem, size = 0x12000, scoped, tag = 'internal scratch']
  %s0 = inlined_call_operand.vmem [shape: s32[8,8], index: 0, kind: input, shape index: {}]
  %s1 = inlined_call_operand.vmem [shape: f32[64,128], index: 1, kind: input, shape index: {}]
  %s2 = inlined_call_operand.vmem [shape: f32[1,8,32], index: 2, kind: input, shape index: {}]
  %s3 = inlined_call_operand.vmem [shape: f32[160,32], index: 3, kind: input, shape index: {}]
  %s4 = inlined_call_operand.vmem [shape: f32[1,1,32], index: 4, kind: input, shape index: {}]
  %s5 = inlined_call_operand.hbm [shape: f32[8,8,32], index: 5, kind: output, shape index: {0}]
  %s6 = inlined_call_operand.hbm [shape: f32[1,8,32], index: 6, kind: output, shape index: {1}]
  %7 = xla_tuple %s5, %s6
  %s8 = sld [smem:[#allocation0]]
  $region38: #{tpu_custom_call.1} parent=0
    _
  %s10 = ssub.s32 1, %s8
  %s11 = scalar_select 0, %s10, %s8
  $region1: #{tpu_custom_call.1} parent=0
    #allocation2 [shape = 'u8[32768]{0}', space=vmem, size = 0x8000, scoped, tag = 'output window, operand 0, single buffered']
    #allocation3 [shape = 's32[1]{0}', space=sflag, size = 0x4, scoped, tag = 'scoped memory for tpu_custom_call.1']
    #allocation4 [shape = 'u8[4096]{0}', space=vmem, size = 0x1000, scoped, tag = 'output window, operand 1, single buffered']
    #allocation5 [shape = 's32[1]{0}', space=sflag, size = 0x4, scoped, tag = 'scoped memory for tpu_custom_call.1']
    %12 = vsyncpa [#allocation3], 0
    %13 = vsyncpa [#allocation5], 0
    // Predicated region
    $region2: #{tpu_custom_call.1} parent=1 // pred_check
      _
    $region3: #{tpu_custom_call.1} parent=1 // pred_check_branch
      %15 = sbr.rel (0) target = $region5
    $region4: #{tpu_custom_call.1} parent=1 // pred_region
      _
    $region5: #{tpu_custom_call.1} parent=1 // pred_fallthru
      _
    // Predicated region
    $region6: #{tpu_custom_call.1} parent=1 // pred_check
      _
    $region7: #{tpu_custom_call.1} parent=1 // pred_check_branch
      %17 = sbr.rel (0) target = $region9
    $region8: #{tpu_custom_call.1} parent=1 // pred_region
      _
    $region9: #{tpu_custom_call.1} parent=1 // pred_fallthru
      _
    // Predicated region
    $region10: #{tpu_custom_call.1} parent=1 // pred_check
      _
    $region11: #{tpu_custom_call.1} parent=1 // pred_check_branch
      %19 = sbr.rel (0) target = $region13
    $region12: #{tpu_custom_call.1} parent=1 // pred_region
      _
    $region13: #{tpu_custom_call.1} parent=1 // pred_fallthru
      _
    // Predicated region
    $region14: #{tpu_custom_call.1} parent=1 // pred_check
      _
    $region15: #{tpu_custom_call.1} parent=1 // pred_check_branch
      %21 = sbr.rel (0) target = $region17
    $region16: #{tpu_custom_call.1} parent=1 // pred_region
      _
    $region17: #{tpu_custom_call.1} parent=1 // pred_fallthru
      _
    // Predicated region
    $region18: #{tpu_custom_call.1} parent=1 // pred_check
      _
    $region19: #{tpu_custom_call.1} parent=1 // pred_check_branch
      %23 = sbr.rel (0) target = $region21
    $region20: #{tpu_custom_call.1} parent=1 // pred_region
      _
    $region21: #{tpu_custom_call.1} parent=1 // pred_fallthru
      _
    %v24 = vld [vmem:[%s0] sm:$0xff]
    %v25 = vlaneseq
    %v26 = vand.u32 %v25, 127
    %v27 = vlaneseq
    %v28 = vshrl.u32 %v27, 7
    %v29 = vsub.s32 0, %v28
    %v30 = vrot.slane %v24, %v29
    %32 = vbcast.lane.b32.xlu0 %v30, 256
    %v33 = vpop.permute.xlu0 %32
    %v34 = vlaneseq
    %v35 = vshrl.u32 %v34, 7
    %v36 = vsub.s32 1, %v35
    %v37 = vrot.slane %v24, %v36
    %39 = vbcast.lane.b32.xlu0 %v37, 256
    %v40 = vpop.permute.xlu0 %39
    %v41 = vlaneseq
    %v42 = vshrl.u32 %v41, 7
    %v43 = vsub.s32 2, %v42
    %v44 = vrot.slane %v24, %v43
    %46 = vbcast.lane.b32.xlu0 %v44, 256
    %v47 = vpop.permute.xlu0 %46
    %v48 = vlaneseq
    %v49 = vshrl.u32 %v48, 7
    %v50 = vsub.s32 3, %v49
    %v51 = vrot.slane %v24, %v50
    %53 = vbcast.lane.b32.xlu0 %v51, 256
    %v54 = vpop.permute.xlu0 %53
    %v55 = vlaneseq
    %v56 = vshrl.u32 %v55, 7
    %v57 = vsub.s32 4, %v56
    %v58 = vrot.slane %v24, %v57
    %60 = vbcast.lane.b32.xlu0 %v58, 256
    %v61 = vpop.permute.xlu0 %60
    %v62 = vlaneseq
    %v63 = vshrl.u32 %v62, 7
    %v64 = vsub.s32 5, %v63
    %v65 = vrot.slane %v24, %v64
    %67 = vbcast.lane.b32.xlu0 %v65, 256
    %v68 = vpop.permute.xlu0 %67
    %v69 = vlaneseq
    %v70 = vshrl.u32 %v69, 7
    %v71 = vsub.s32 6, %v70
    %v72 = vrot.slane %v24, %v71
    %74 = vbcast.lane.b32.xlu0 %v72, 256
    %v75 = vpop.permute.xlu0 %74
    %v76 = vlaneseq
    %v77 = vshrl.u32 %v76, 7
    %v78 = vsub.s32 7, %v77
    %v79 = vrot.slane %v24, %v78
    %81 = vbcast.lane.b32.xlu0 %v79, 256
    %v82 = vpop.permute.xlu0 %81
    %vm83 = vcmp.eq.s32.totalorder %v33, %v26
    %vm84 = vcmp.eq.s32.totalorder %v40, %v26
    %vm85 = vcmp.eq.s32.totalorder %v47, %v26
    %vm86 = vcmp.eq.s32.totalorder %v54, %v26
    %vm87 = vcmp.eq.s32.totalorder %v61, %v26
    %vm88 = vcmp.eq.s32.totalorder %v68, %v26
    %vm89 = vcmp.eq.s32.totalorder %v75, %v26
    %vm90 = vcmp.eq.s32.totalorder %v82, %v26
    %v91 = vsel %vm83, 1, 0
    %v92 = vsel %vm84, 1, 0
    %v93 = vsel %vm85, 1, 0
    %v94 = vsel %vm86, 1, 0
    %v95 = vsel %vm87, 1, 0
    %v96 = vsel %vm88, 1, 0
    %v97 = vsel %vm89, 1, 0
    %v98 = vsel %vm90, 1, 0
    %v99 = vcvt.s32.f32 %v91
    %v100 = vcvt.s32.f32 %v92
    %v101 = vcvt.s32.f32 %v93
    %v102 = vcvt.s32.f32 %v94
    %v103 = vcvt.s32.f32 %v95
    %v104 = vcvt.s32.f32 %v96
    %v105 = vcvt.s32.f32 %v97
    %v106 = vcvt.s32.f32 %v98
    %v107 = vld [vmem:[%s1] sm:$0xff]
    %v108 = vld [vmem:[%s1 + $0x8] sm:$0xff]
    %v109 = vld [vmem:[%s1 + $0x10] sm:$0xff]
    %v110 = vld [vmem:[%s1 + $0x18] sm:$0xff]
    %v111 = vld [vmem:[%s1 + $0x20] sm:$0xff]
    %v112 = vld [vmem:[%s1 + $0x28] sm:$0xff]
    %v113 = vld [vmem:[%s1 + $0x30] sm:$0xff]
    %v114 = vld [vmem:[%s1 + $0x38] sm:$0xff]
    %v115 = vadd.f32 %v99, %v107
    %v116 = vadd.f32 %v100, %v108
    %v117 = vadd.f32 %v101, %v109
    %v118 = vadd.f32 %v102, %v110
    %v119 = vadd.f32 %v103, %v111
    %v120 = vadd.f32 %v104, %v112
    %v121 = vadd.f32 %v105, %v113
    %v122 = vadd.f32 %v106, %v114
    %v123 = vld [vmem:[%s3] sm:$0xff]
    %v124 = vld [vmem:[%s3 + $0x8] sm:$0xff]
    %v125 = vld [vmem:[%s3 + $0x10] sm:$0xff]
    %v126 = vld [vmem:[%s3 + $0x18] sm:$0xff]
    %v127 = vld [vmem:[%s3 + $0x20] sm:$0xff]
    %v128 = vld [vmem:[%s3 + $0x28] sm:$0xff]
    %v129 = vld [vmem:[%s3 + $0x30] sm:$0xff]
    %v130 = vld [vmem:[%s3 + $0x38] sm:$0xff]
    %v131 = vld [vmem:[%s3 + $0x40] sm:$0xff]
    %v132 = vld [vmem:[%s3 + $0x48] sm:$0xff]
    %v133 = vld [vmem:[%s3 + $0x50] sm:$0xff]
    %v134 = vld [vmem:[%s3 + $0x58] sm:$0xff]
    %v135 = vld [vmem:[%s3 + $0x60] sm:$0xff]
    %v136 = vld [vmem:[%s3 + $0x68] sm:$0xff]
    %v137 = vld [vmem:[%s3 + $0x70] sm:$0xff]
    %v138 = vld [vmem:[%s3 + $0x78] sm:$0xff]
    %v139 = vld [vmem:[%s4] sm:$0x1]
    %v141 = vlaneseq
    %v142 = vshrl.u32 %v141, 7
    %v143 = vsub.s32 0, %v142
    %v144 = vrot.slane %v139, %v143
    %146 = vmatprep.subr.mxu0 0.0
    %147 = vmatpush1.msra.mxu0 %v123
    %148 = vmatprep.subr.mxu0 0.0
    %149 = vmatpush1.msra.mxu0 %v124
    %150 = vmatprep.subr.mxu0 0.0
    %151 = vmatpush1.msra.mxu0 %v125
    %152 = vmatprep.subr.mxu0 0.0
    %153 = vmatpush1.msra.mxu0 %v126
    %154 = vmatprep.subr.mxu0 0.0
    %155 = vmatpush1.msra.mxu0 %v127
    %156 = vmatprep.subr.mxu0 0.0
    %157 = vmatpush1.msra.mxu0 %v128
    %158 = vmatprep.subr.mxu0 0.0
    %159 = vmatpush1.msra.mxu0 %v129
    %160 = vmatprep.subr.mxu0 0.0
    %161 = vmatpush1.msra.mxu0 %v130
    %162 = vmatprep.subr.mxu0 0.0
    %163 = vmatpush1.msra.mxu0 %v131
    %164 = vmatprep.subr.mxu0 0.0
    %165 = vmatpush1.msra.mxu0 %v132
    %166 = vmatprep.subr.mxu0 0.0
    %167 = vmatpush1.msra.mxu0 %v133
    %168 = vmatprep.subr.mxu0 0.0
    %169 = vmatpush1.msra.mxu0 %v134
    %170 = vmatprep.subr.mxu0 0.0
    %171 = vmatpush1.msra.mxu0 %v135
    %172 = vmatprep.subr.mxu0 0.0
    %173 = vmatpush1.msra.mxu0 %v136
    %174 = vmatprep.subr.mxu0 0.0
    %175 = vmatpush1.msra.mxu0 %v137
    %176 = vmatprep.subr.mxu0 0.0
    %177 = vmatpush1.msra.mxu0 %v138
    %178 = vmatprep.subr.mxu0 0.0
    %179 = vmatpush1.msra.mxu0 0.0
    %180 = vmatprep.subr.mxu0 0.0
    %181 = vmatpush1.msra.mxu0 0.0
    %182 = vmatprep.subr.mxu0 0.0
    %183 = vmatpush1.msra.mxu0 0.0
    %184 = vmatprep.subr.mxu0 0.0
    %185 = vmatpush1.msra.mxu0 0.0
    %186 = vmatprep.subr.mxu0 0.0
    %187 = vmatpush1.msra.mxu0 0.0
    %188 = vmatprep.subr.mxu0 0.0
    %189 = vmatpush1.msra.mxu0 0.0
    %190 = vmatprep.subr.mxu0 0.0
    %191 = vmatpush1.msra.mxu0 0.0
    %192 = vmatprep.subr.mxu0 0.0
    %193 = vmatpush1.msra.mxu0 0.0
    %194 = vmatprep.subr.mxu0 0.0
    %195 = vmatpush1.msra.mxu0 0.0
    %196 = vmatprep.subr.mxu0 0.0
    %197 = vmatpush1.msra.mxu0 0.0
    %198 = vmatprep.subr.mxu0 0.0
    %199 = vmatpush1.msra.mxu0 0.0
    %200 = vmatprep.subr.mxu0 0.0
    %201 = vmatpush1.msra.mxu0 0.0
    %202 = vmatprep.subr.mxu0 0.0
    %203 = vmatpush1.msra.mxu0 0.0
    %204 = vmatprep.subr.mxu0 0.0
    %205 = vmatpush1.msra.mxu0 0.0
    %206 = vmatprep.subr.mxu0 0.0
    %207 = vmatpush1.msra.mxu0 0.0
    %208 = vmatprep.subr.mxu0 0.0
    %209 = vmatpush1.msra.mxu0 0.0
    %210 = vmatprep.mubr.f32.mxu0 0.0
    %211 = vmatmul.mubr.f32.gmra.mrb[0].mxu0 %v115
    %v212 = vpop.f32.mrb[0].mxu0
    %v213 = vadd.f32 %v144, %v212
    %v214 = vpop.f32.mrb[0].mxu0
    %215 = vmatprep.mubr.f32.mxu0 0.0
    %216 = vmatmul.mubr.f32.gmra.mrb[0].mxu0 %v116
    %v217 = vpop.f32.mrb[0].mxu0
    %v218 = vadd.f32 %v144, %v217
    %v219 = vpop.f32.mrb[0].mxu0
    %220 = vmatprep.mubr.f32.mxu0 0.0
    %221 = vmatmul.mubr.f32.gmra.mrb[0].mxu0 %v117
    %v222 = vpop.f32.mrb[0].mxu0
    %v223 = vadd.f32 %v144, %v222
    %v224 = vpop.f32.mrb[0].mxu0
    %225 = vmatprep.mubr.f32.mxu0 0.0
    %226 = vmatmul.mubr.f32.gmra.mrb[0].mxu0 %v118
    %v227 = vpop.f32.mrb[0].mxu0
    %v228 = vadd.f32 %v144, %v227
    %v229 = vpop.f32.mrb[0].mxu0
    %230 = vmatprep.mubr.f32.mxu0 0.0
    %231 = vmatmul.mubr.f32.gmra.mrb[0].mxu0 %v119
    %v232 = vpop.f32.mrb[0].mxu0
    %v233 = vadd.f32 %v144, %v232
    %v234 = vpop.f32.mrb[0].mxu0
    %235 = vmatprep.mubr.f32.mxu0 0.0
    %236 = vmatmul.mubr.f32.gmra.mrb[0].mxu0 %v120
    %v237 = vpop.f32.mrb[0].mxu0
    %v238 = vadd.f32 %v144, %v237
    %v239 = vpop.f32.mrb[0].mxu0
    %240 = vmatprep.mubr.f32.mxu0 0.0
    %241 = vmatmul.mubr.f32.gmra.mrb[0].mxu0 %v121
    %v242 = vpop.f32.mrb[0].mxu0
    %v243 = vadd.f32 %v144, %v242
    %v244 = vpop.f32.mrb[0].mxu0
    %245 = vmatprep.mubr.f32.mxu0 0.0
    %246 = vmatmul.mubr.f32.gmra.mrb[0].mxu0 %v122
    %v247 = vpop.f32.mrb[0].mxu0
    %v248 = vadd.f32 %v144, %v247
    %v249 = vpop.f32.mrb[0].mxu0
    %250 = vdwg.mxu0
    %v251 = vld [vmem:[%s3 + $0x80] sm:$0xff]
    %v252 = vld [vmem:[%s3 + $0x88] sm:$0xff]
    %v253 = vld [vmem:[%s3 + $0x90] sm:$0xff]
    %v254 = vld [vmem:[%s3 + $0x98] sm:$0xff]
    %v255 = vld [vmem:[%s2] sm:$0xff]
    %vm256 = vcmask 261120
    %v258 = vsel %vm256, %v255, 0
    %v261 = vsel %vm256, %v251, 0
    %v264 = vsel %vm256, %v252, 0
    %v267 = vsel %vm256, %v253, 0
    %v270 = vsel %vm256, %v254, 0
    %272 = vmatprep.subr.mxu0 0.0
    %273 = vmatpush1.xpose.msra.mxu0 %v261
    %274 = vmatprep.subr.mxu0 0.0
    %275 = vmatpush1.xpose.msra.mxu0 %v264
    %276 = vmatprep.subr.mxu0 0.0
    %277 = vmatpush1.xpose.msra.mxu0 %v267
    %278 = vmatprep.subr.mxu0 0.0
    %279 = vmatpush1.xpose.msra.mxu0 %v270
    %280 = vmatprep.subr.mxu0 0.0
    %281 = vmatpush1.xpose.msra.mxu0 0.0
    %282 = vmatprep.subr.mxu0 0.0
    %283 = vmatpush1.xpose.msra.mxu0 0.0
    %284 = vmatprep.subr.mxu0 0.0
    %285 = vmatpush1.xpose.msra.mxu0 0.0
    %286 = vmatprep.subr.mxu0 0.0
    %287 = vmatpush1.xpose.msra.mxu0 0.0
    %288 = vmatprep.subr.mxu0 0.0
    %289 = vmatpush1.xpose.msra.mxu0 0.0
    %290 = vmatprep.subr.mxu0 0.0
    %291 = vmatpush1.xpose.msra.mxu0 0.0
    %292 = vmatprep.subr.mxu0 0.0
    %293 = vmatpush1.xpose.msra.mxu0 0.0
    %294 = vmatprep.subr.mxu0 0.0
    %295 = vmatpush1.xpose.msra.mxu0 0.0
    %296 = vmatprep.subr.mxu0 0.0
    %297 = vmatpush1.xpose.msra.mxu0 0.0
    %298 = vmatprep.subr.mxu0 0.0
    %299 = vmatpush1.xpose.msra.mxu0 0.0
    %300 = vmatprep.subr.mxu0 0.0
    %301 = vmatpush1.xpose.msra.mxu0 0.0
    %302 = vmatprep.subr.mxu0 0.0
    %303 = vmatpush1.xpose.msra.mxu0 0.0
    %304 = vmatprep.subr.mxu0 0.0
    %305 = vmatpush1.xpose.msra.mxu0 0.0
    %306 = vmatprep.subr.mxu0 0.0
    %307 = vmatpush1.xpose.msra.mxu0 0.0
    %308 = vmatprep.subr.mxu0 0.0
    %309 = vmatpush1.xpose.msra.mxu0 0.0
    %310 = vmatprep.subr.mxu0 0.0
    %311 = vmatpush1.xpose.msra.mxu0 0.0
    %312 = vmatprep.subr.mxu0 0.0
    %313 = vmatpush1.xpose.msra.mxu0 0.0
    %314 = vmatprep.subr.mxu0 0.0
    %315 = vmatpush1.xpose.msra.mxu0 0.0
    %316 = vmatprep.subr.mxu0 0.0
    %317 = vmatpush1.xpose.msra.mxu0 0.0
    %318 = vmatprep.subr.mxu0 0.0
    %319 = vmatpush1.xpose.msra.mxu0 0.0
    %320 = vmatprep.subr.mxu0 0.0
    %321 = vmatpush1.xpose.msra.mxu0 0.0
    %322 = vmatprep.subr.mxu0 0.0
    %323 = vmatpush1.xpose.msra.mxu0 0.0
    %324 = vmatprep.subr.mxu0 0.0
    %325 = vmatpush1.xpose.msra.mxu0 0.0
    %326 = vmatprep.subr.mxu0 0.0
    %327 = vmatpush1.xpose.msra.mxu0 0.0
    %328 = vmatprep.subr.mxu0 0.0
    %329 = vmatpush1.xpose.msra.mxu0 0.0
    %330 = vmatprep.subr.mxu0 0.0
    %331 = vmatpush1.xpose.msra.mxu0 0.0
    %332 = vmatprep.subr.mxu0 0.0
    %333 = vmatpush1.xpose.msra.mxu0 0.0
    %334 = vmatprep.subr.mxu0 0.0
    %335 = vmatpush1.xpose.msra.mxu0 0.0
    %336 = vmatprep.mubr.f32.mxu0 0.0
    %337 = vmatmul.mubr.f32.gmra.mrb[0].mxu0 %v258
    %v338 = vpop.f32.mrb[0].mxu0
    %v339 = vadd.f32 0.0, %v338
    %v340 = vpop.f32.mrb[0].mxu0
    %341 = vdwg.mxu0
    %v342 = vadd.f32 %v213, %v339
    %v343 = vtanh.pop %v342
    %v345 = vsel %vm256, %v343, 0
    %347 = vmatprep.subr.mxu0 0.0
    %348 = vmatpush1.xpose.msra.mxu0 %v261
    %349 = vmatprep.subr.mxu0 0.0
    %350 = vmatpush1.xpose.msra.mxu0 %v264
    %351 = vmatprep.subr.mxu0 0.0
    %352 = vmatpush1.xpose.msra.mxu0 %v267
    %353 = vmatprep.subr.mxu0 0.0
    %354 = vmatpush1.xpose.msra.mxu0 %v270
    %355 = vmatprep.subr.mxu0 0.0
    %356 = vmatpush1.xpose.msra.mxu0 0.0
    %357 = vmatprep.subr.mxu0 0.0
    %358 = vmatpush1.xpose.msra.mxu0 0.0
    %359 = vmatprep.subr.mxu0 0.0
    %360 = vmatpush1.xpose.msra.mxu0 0.0
    %361 = vmatprep.subr.mxu0 0.0
    %362 = vmatpush1.xpose.msra.mxu0 0.0
    %363 = vmatprep.subr.mxu0 0.0
    %364 = vmatpush1.xpose.msra.mxu0 0.0
    %365 = vmatprep.subr.mxu0 0.0
    %366 = vmatpush1.xpose.msra.mxu0 0.0
    %367 = vmatprep.subr.mxu0 0.0
    %368 = vmatpush1.xpose.msra.mxu0 0.0
    %369 = vmatprep.subr.mxu0 0.0
    %370 = vmatpush1.xpose.msra.mxu0 0.0
    %371 = vmatprep.subr.mxu0 0.0
    %372 = vmatpush1.xpose.msra.mxu0 0.0
    %373 = vmatprep.subr.mxu0 0.0
    %374 = vmatpush1.xpose.msra.mxu0 0.0
    %375 = vmatprep.subr.mxu0 0.0
    %376 = vmatpush1.xpose.msra.mxu0 0.0
    %377 = vmatprep.subr.mxu0 0.0
    %378 = vmatpush1.xpose.msra.mxu0 0.0
    %379 = vmatprep.subr.mxu0 0.0
    %380 = vmatpush1.xpose.msra.mxu0 0.0
    %381 = vmatprep.subr.mxu0 0.0
    %382 = vmatpush1.xpose.msra.mxu0 0.0
    %383 = vmatprep.subr.mxu0 0.0
    %384 = vmatpush1.xpose.msra.mxu0 0.0
    %385 = vmatprep.subr.mxu0 0.0
    %386 = vmatpush1.xpose.msra.mxu0 0.0
    %387 = vmatprep.subr.mxu0 0.0
    %388 = vmatpush1.xpose.msra.mxu0 0.0
    %389 = vmatprep.subr.mxu0 0.0
    %390 = vmatpush1.xpose.msra.mxu0 0.0
    %391 = vmatprep.subr.mxu0 0.0
    %392 = vmatpush1.xpose.msra.mxu0 0.0
    %393 = vmatprep.subr.mxu0 0.0
    %394 = vmatpush1.xpose.msra.mxu0 0.0
    %395 = vmatprep.subr.mxu0 0.0
    %396 = vmatpush1.xpose.msra.mxu0 0.0
    %397 = vmatprep.subr.mxu0 0.0
    %398 = vmatpush1.xpose.msra.mxu0 0.0
    %399 = vmatprep.subr.mxu0 0.0
    %400 = vmatpush1.xpose.msra.mxu0 0.0
    %401 = vmatprep.subr.mxu0 0.0
    %402 = vmatpush1.xpose.msra.mxu0 0.0
    %403 = vmatprep.subr.mxu0 0.0
    %404 = vmatpush1.xpose.msra.mxu0 0.0
    %405 = vmatprep.subr.mxu0 0.0
    %406 = vmatpush1.xpose.msra.mxu0 0.0
    %407 = vmatprep.subr.mxu0 0.0
    %408 = vmatpush1.xpose.msra.mxu0 0.0
    %409 = vmatprep.subr.mxu0 0.0
    %410 = vmatpush1.xpose.msra.mxu0 0.0
    %411 = vmatprep.mubr.f32.mxu0 0.0
    %412 = vmatmul.mubr.f32.gmra.mrb[0].mxu0 %v345
    %v413 = vpop.f32.mrb[0].mxu0
    %v414 = vadd.f32 0.0, %v413
    %v415 = vpop.f32.mrb[0].mxu0
    %416 = vdwg.mxu0
    %v417 = vadd.f32 %v218, %v414
    %v418 = vtanh.pop %v417
    %v420 = vsel %vm256, %v418, 0
    %422 = vmatprep.subr.mxu0 0.0
    %423 = vmatpush1.xpose.msra.mxu0 %v261
    %424 = vmatprep.subr.mxu0 0.0
    %425 = vmatpush1.xpose.msra.mxu0 %v264
    %426 = vmatprep.subr.mxu0 0.0
    %427 = vmatpush1.xpose.msra.mxu0 %v267
    %428 = vmatprep.subr.mxu0 0.0
    %429 = vmatpush1.xpose.msra.mxu0 %v270
    %430 = vmatprep.subr.mxu0 0.0
    %431 = vmatpush1.xpose.msra.mxu0 0.0
    %432 = vmatprep.subr.mxu0 0.0
    %433 = vmatpush1.xpose.msra.mxu0 0.0
    %434 = vmatprep.subr.mxu0 0.0
    %435 = vmatpush1.xpose.msra.mxu0 0.0
    %436 = vmatprep.subr.mxu0 0.0
    %437 = vmatpush1.xpose.msra.mxu0 0.0
    %438 = vmatprep.subr.mxu0 0.0
    %439 = vmatpush1.xpose.msra.mxu0 0.0
    %440 = vmatprep.subr.mxu0 0.0
    %441 = vmatpush1.xpose.msra.mxu0 0.0
    %442 = vmatprep.subr.mxu0 0.0
    %443 = vmatpush1.xpose.msra.mxu0 0.0
    %444 = vmatprep.subr.mxu0 0.0
    %445 = vmatpush1.xpose.msra.mxu0 0.0
    %446 = vmatprep.subr.mxu0 0.0
    %447 = vmatpush1.xpose.msra.mxu0 0.0
    %448 = vmatprep.subr.mxu0 0.0
    %449 = vmatpush1.xpose.msra.mxu0 0.0
    %450 = vmatprep.subr.mxu0 0.0
    %451 = vmatpush1.xpose.msra.mxu0 0.0
    %452 = vmatprep.subr.mxu0 0.0
    %453 = vmatpush1.xpose.msra.mxu0 0.0
    %454 = vmatprep.subr.mxu0 0.0
    %455 = vmatpush1.xpose.msra.mxu0 0.0
    %456 = vmatprep.subr.mxu0 0.0
    %457 = vmatpush1.xpose.msra.mxu0 0.0
    %458 = vmatprep.subr.mxu0 0.0
    %459 = vmatpush1.xpose.msra.mxu0 0.0
    %460 = vmatprep.subr.mxu0 0.0
    %461 = vmatpush1.xpose.msra.mxu0 0.0
    %462 = vmatprep.subr.mxu0 0.0
    %463 = vmatpush1.xpose.msra.mxu0 0.0
    %464 = vmatprep.subr.mxu0 0.0
    %465 = vmatpush1.xpose.msra.mxu0 0.0
    %466 = vmatprep.subr.mxu0 0.0
    %467 = vmatpush1.xpose.msra.mxu0 0.0
    %468 = vmatprep.subr.mxu0 0.0
    %469 = vmatpush1.xpose.msra.mxu0 0.0
    %470 = vmatprep.subr.mxu0 0.0
    %471 = vmatpush1.xpose.msra.mxu0 0.0
    %472 = vmatprep.subr.mxu0 0.0
    %473 = vmatpush1.xpose.msra.mxu0 0.0
    %474 = vmatprep.subr.mxu0 0.0
    %475 = vmatpush1.xpose.msra.mxu0 0.0
    %476 = vmatprep.subr.mxu0 0.0
    %477 = vmatpush1.xpose.msra.mxu0 0.0
    %478 = vmatprep.subr.mxu0 0.0
    %479 = vmatpush1.xpose.msra.mxu0 0.0
    %480 = vmatprep.subr.mxu0 0.0
    %481 = vmatpush1.xpose.msra.mxu0 0.0
    %482 = vmatprep.subr.mxu0 0.0
    %483 = vmatpush1.xpose.msra.mxu0 0.0
    %484 = vmatprep.subr.mxu0 0.0
    %485 = vmatpush1.xpose.msra.mxu0 0.0
    %486 = vmatprep.mubr.f32.mxu0 0.0
    %487 = vmatmul.mubr.f32.gmra.mrb[0].mxu0 %v420
    %v488 = vpop.f32.mrb[0].mxu0
    %v489 = vadd.f32 0.0, %v488
    %v490 = vpop.f32.mrb[0].mxu0
    %491 = vdwg.mxu0
    %v492 = vadd.f32 %v223, %v489
    %v493 = vtanh.pop %v492
    %v495 = vsel %vm256, %v493, 0
    %497 = vmatprep.subr.mxu0 0.0
    %498 = vmatpush1.xpose.msra.mxu0 %v261
    %499 = vmatprep.subr.mxu0 0.0
    %500 = vmatpush1.xpose.msra.mxu0 %v264
    %501 = vmatprep.subr.mxu0 0.0
    %502 = vmatpush1.xpose.msra.mxu0 %v267
    %503 = vmatprep.subr.mxu0 0.0
    %504 = vmatpush1.xpose.msra.mxu0 %v270
    %505 = vmatprep.subr.mxu0 0.0
    %506 = vmatpush1.xpose.msra.mxu0 0.0
    %507 = vmatprep.subr.mxu0 0.0
    %508 = vmatpush1.xpose.msra.mxu0 0.0
    %509 = vmatprep.subr.mxu0 0.0
    %510 = vmatpush1.xpose.msra.mxu0 0.0
    %511 = vmatprep.subr.mxu0 0.0
    %512 = vmatpush1.xpose.msra.mxu0 0.0
    %513 = vmatprep.subr.mxu0 0.0
    %514 = vmatpush1.xpose.msra.mxu0 0.0
    %515 = vmatprep.subr.mxu0 0.0
    %516 = vmatpush1.xpose.msra.mxu0 0.0
    %517 = vmatprep.subr.mxu0 0.0
    %518 = vmatpush1.xpose.msra.mxu0 0.0
    %519 = vmatprep.subr.mxu0 0.0
    %520 = vmatpush1.xpose.msra.mxu0 0.0
    %521 = vmatprep.subr.mxu0 0.0
    %522 = vmatpush1.xpose.msra.mxu0 0.0
    %523 = vmatprep.subr.mxu0 0.0
    %524 = vmatpush1.xpose.msra.mxu0 0.0
    %525 = vmatprep.subr.mxu0 0.0
    %526 = vmatpush1.xpose.msra.mxu0 0.0
    %527 = vmatprep.subr.mxu0 0.0
    %528 = vmatpush1.xpose.msra.mxu0 0.0
    %529 = vmatprep.subr.mxu0 0.0
    %530 = vmatpush1.xpose.msra.mxu0 0.0
    %531 = vmatprep.subr.mxu0 0.0
    %532 = vmatpush1.xpose.msra.mxu0 0.0
    %533 = vmatprep.subr.mxu0 0.0
    %534 = vmatpush1.xpose.msra.mxu0 0.0
    %535 = vmatprep.subr.mxu0 0.0
    %536 = vmatpush1.xpose.msra.mxu0 0.0
    %537 = vmatprep.subr.mxu0 0.0
    %538 = vmatpush1.xpose.msra.mxu0 0.0
    %539 = vmatprep.subr.mxu0 0.0
    %540 = vmatpush1.xpose.msra.mxu0 0.0
    %541 = vmatprep.subr.mxu0 0.0
    %542 = vmatpush1.xpose.msra.mxu0 0.0
    %543 = vmatprep.subr.mxu0 0.0
    %544 = vmatpush1.xpose.msra.mxu0 0.0
    %545 = vmatprep.subr.mxu0 0.0
    %546 = vmatpush1.xpose.msra.mxu0 0.0
    %547 = vmatprep.subr.mxu0 0.0
    %548 = vmatpush1.xpose.msra.mxu0 0.0
    %549 = vmatprep.subr.mxu0 0.0
    %550 = vmatpush1.xpose.msra.mxu0 0.0
    %551 = vmatprep.subr.mxu0 0.0
    %552 = vmatpush1.xpose.msra.mxu0 0.0
    %553 = vmatprep.subr.mxu0 0.0
    %554 = vmatpush1.xpose.msra.mxu0 0.0
    %555 = vmatprep.subr.mxu0 0.0
    %556 = vmatpush1.xpose.msra.mxu0 0.0
    %557 = vmatprep.subr.mxu0 0.0
    %558 = vmatpush1.xpose.msra.mxu0 0.0
    %559 = vmatprep.subr.mxu0 0.0
    %560 = vmatpush1.xpose.msra.mxu0 0.0
    %561 = vmatprep.mubr.f32.mxu0 0.0
    %562 = vmatmul.mubr.f32.gmra.mrb[0].mxu0 %v495
    %v563 = vpop.f32.mrb[0].mxu0
    %v564 = vadd.f32 0.0, %v563
    %v565 = vpop.f32.mrb[0].mxu0
    %566 = vdwg.mxu0
    %v567 = vadd.f32 %v228, %v564
    %v568 = vtanh.pop %v567
    %v570 = vsel %vm256, %v568, 0
    %572 = vmatprep.subr.mxu0 0.0
    %573 = vmatpush1.xpose.msra.mxu0 %v261
    %574 = vmatprep.subr.mxu0 0.0
    %575 = vmatpush1.xpose.msra.mxu0 %v264
    %576 = vmatprep.subr.mxu0 0.0
    %577 = vmatpush1.xpose.msra.mxu0 %v267
    %578 = vmatprep.subr.mxu0 0.0
    %579 = vmatpush1.xpose.msra.mxu0 %v270
    %580 = vmatprep.subr.mxu0 0.0
    %581 = vmatpush1.xpose.msra.mxu0 0.0
    %582 = vmatprep.subr.mxu0 0.0
    %583 = vmatpush1.xpose.msra.mxu0 0.0
    %584 = vmatprep.subr.mxu0 0.0
    %585 = vmatpush1.xpose.msra.mxu0 0.0
    %586 = vmatprep.subr.mxu0 0.0
    %587 = vmatpush1.xpose.msra.mxu0 0.0
    %588 = vmatprep.subr.mxu0 0.0
    %589 = vmatpush1.xpose.msra.mxu0 0.0
    %590 = vmatprep.subr.mxu0 0.0
    %591 = vmatpush1.xpose.msra.mxu0 0.0
    %592 = vmatprep.subr.mxu0 0.0
    %593 = vmatpush1.xpose.msra.mxu0 0.0
    %594 = vmatprep.subr.mxu0 0.0
    %595 = vmatpush1.xpose.msra.mxu0 0.0
    %596 = vmatprep.subr.mxu0 0.0
    %597 = vmatpush1.xpose.msra.mxu0 0.0
    %598 = vmatprep.subr.mxu0 0.0
    %599 = vmatpush1.xpose.msra.mxu0 0.0
    %600 = vmatprep.subr.mxu0 0.0
    %601 = vmatpush1.xpose.msra.mxu0 0.0
    %602 = vmatprep.subr.mxu0 0.0
    %603 = vmatpush1.xpose.msra.mxu0 0.0
    %604 = vmatprep.subr.mxu0 0.0
    %605 = vmatpush1.xpose.msra.mxu0 0.0
    %606 = vmatprep.subr.mxu0 0.0
    %607 = vmatpush1.xpose.msra.mxu0 0.0
    %608 = vmatprep.subr.mxu0 0.0
    %609 = vmatpush1.xpose.msra.mxu0 0.0
    %610 = vmatprep.subr.mxu0 0.0
    %611 = vmatpush1.xpose.msra.mxu0 0.0
    %612 = vmatprep.subr.mxu0 0.0
    %613 = vmatpush1.xpose.msra.mxu0 0.0
    %614 = vmatprep.subr.mxu0 0.0
    %615 = vmatpush1.xpose.msra.mxu0 0.0
    %616 = vmatprep.subr.mxu0 0.0
    %617 = vmatpush1.xpose.msra.mxu0 0.0
    %618 = vmatprep.subr.mxu0 0.0
    %619 = vmatpush1.xpose.msra.mxu0 0.0
    %620 = vmatprep.subr.mxu0 0.0
    %621 = vmatpush1.xpose.msra.mxu0 0.0
    %622 = vmatprep.subr.mxu0 0.0
    %623 = vmatpush1.xpose.msra.mxu0 0.0
    %624 = vmatprep.subr.mxu0 0.0
    %625 = vmatpush1.xpose.msra.mxu0 0.0
    %626 = vmatprep.subr.mxu0 0.0
    %627 = vmatpush1.xpose.msra.mxu0 0.0
    %628 = vmatprep.subr.mxu0 0.0
    %629 = vmatpush1.xpose.msra.mxu0 0.0
    %630 = vmatprep.subr.mxu0 0.0
    %631 = vmatpush1.xpose.msra.mxu0 0.0
    %632 = vmatprep.subr.mxu0 0.0
    %633 = vmatpush1.xpose.msra.mxu0 0.0
    %634 = vmatprep.subr.mxu0 0.0
    %635 = vmatpush1.xpose.msra.mxu0 0.0
    %636 = vmatprep.mubr.f32.mxu0 0.0
    %637 = vmatmul.mubr.f32.gmra.mrb[0].mxu0 %v570
    %v638 = vpop.f32.mrb[0].mxu0
    %v639 = vadd.f32 0.0, %v638
    %v640 = vpop.f32.mrb[0].mxu0
    %641 = vdwg.mxu0
    %v642 = vadd.f32 %v233, %v639
    %v643 = vtanh.pop %v642
    %v645 = vsel %vm256, %v643, 0
    %647 = vmatprep.subr.mxu0 0.0
    %648 = vmatpush1.xpose.msra.mxu0 %v261
    %649 = vmatprep.subr.mxu0 0.0
    %650 = vmatpush1.xpose.msra.mxu0 %v264
    %651 = vmatprep.subr.mxu0 0.0
    %652 = vmatpush1.xpose.msra.mxu0 %v267
    %653 = vmatprep.subr.mxu0 0.0
    %654 = vmatpush1.xpose.msra.mxu0 %v270
    %655 = vmatprep.subr.mxu0 0.0
    %656 = vmatpush1.xpose.msra.mxu0 0.0
    %657 = vmatprep.subr.mxu0 0.0
    %658 = vmatpush1.xpose.msra.mxu0 0.0
    %659 = vmatprep.subr.mxu0 0.0
    %660 = vmatpush1.xpose.msra.mxu0 0.0
    %661 = vmatprep.subr.mxu0 0.0
    %662 = vmatpush1.xpose.msra.mxu0 0.0
    %663 = vmatprep.subr.mxu0 0.0
    %664 = vmatpush1.xpose.msra.mxu0 0.0
    %665 = vmatprep.subr.mxu0 0.0
    %666 = vmatpush1.xpose.msra.mxu0 0.0
    %667 = vmatprep.subr.mxu0 0.0
    %668 = vmatpush1.xpose.msra.mxu0 0.0
    %669 = vmatprep.subr.mxu0 0.0
    %670 = vmatpush1.xpose.msra.mxu0 0.0
    %671 = vmatprep.subr.mxu0 0.0
    %672 = vmatpush1.xpose.msra.mxu0 0.0
    %673 = vmatprep.subr.mxu0 0.0
    %674 = vmatpush1.xpose.msra.mxu0 0.0
    %675 = vmatprep.subr.mxu0 0.0
    %676 = vmatpush1.xpose.msra.mxu0 0.0
    %677 = vmatprep.subr.mxu0 0.0
    %678 = vmatpush1.xpose.msra.mxu0 0.0
    %679 = vmatprep.subr.mxu0 0.0
    %680 = vmatpush1.xpose.msra.mxu0 0.0
    %681 = vmatprep.subr.mxu0 0.0
    %682 = vmatpush1.xpose.msra.mxu0 0.0
    %683 = vmatprep.subr.mxu0 0.0
    %684 = vmatpush1.xpose.msra.mxu0 0.0
    %685 = vmatprep.subr.mxu0 0.0
    %686 = vmatpush1.xpose.msra.mxu0 0.0
    %687 = vmatprep.subr.mxu0 0.0
    %688 = vmatpush1.xpose.msra.mxu0 0.0
    %689 = vmatprep.subr.mxu0 0.0
    %690 = vmatpush1.xpose.msra.mxu0 0.0
    %691 = vmatprep.subr.mxu0 0.0
    %692 = vmatpush1.xpose.msra.mxu0 0.0
    %693 = vmatprep.subr.mxu0 0.0
    %694 = vmatpush1.xpose.msra.mxu0 0.0
    %695 = vmatprep.subr.mxu0 0.0
    %696 = vmatpush1.xpose.msra.mxu0 0.0
    %697 = vmatprep.subr.mxu0 0.0
    %698 = vmatpush1.xpose.msra.mxu0 0.0
    %699 = vmatprep.subr.mxu0 0.0
    %700 = vmatpush1.xpose.msra.mxu0 0.0
    %701 = vmatprep.subr.mxu0 0.0
    %702 = vmatpush1.xpose.msra.mxu0 0.0
    %703 = vmatprep.subr.mxu0 0.0
    %704 = vmatpush1.xpose.msra.mxu0 0.0
    %705 = vmatprep.subr.mxu0 0.0
    %706 = vmatpush1.xpose.msra.mxu0 0.0
    %707 = vmatprep.subr.mxu0 0.0
    %708 = vmatpush1.xpose.msra.mxu0 0.0
    %709 = vmatprep.subr.mxu0 0.0
    %710 = vmatpush1.xpose.msra.mxu0 0.0
    %711 = vmatprep.mubr.f32.mxu0 0.0
    %712 = vmatmul.mubr.f32.gmra.mrb[0].mxu0 %v645
    %v713 = vpop.f32.mrb[0].mxu0
    %v714 = vadd.f32 0.0, %v713
    %v715 = vpop.f32.mrb[0].mxu0
    %716 = vdwg.mxu0
    %v717 = vadd.f32 %v238, %v714
    %v718 = vtanh.pop %v717
    %v720 = vsel %vm256, %v718, 0
    %722 = vmatprep.subr.mxu0 0.0
    %723 = vmatpush1.xpose.msra.mxu0 %v261
    %724 = vmatprep.subr.mxu0 0.0
    %725 = vmatpush1.xpose.msra.mxu0 %v264
    %726 = vmatprep.subr.mxu0 0.0
    %727 = vmatpush1.xpose.msra.mxu0 %v267
    %728 = vmatprep.subr.mxu0 0.0
    %729 = vmatpush1.xpose.msra.mxu0 %v270
    %730 = vmatprep.subr.mxu0 0.0
    %731 = vmatpush1.xpose.msra.mxu0 0.0
    %732 = vmatprep.subr.mxu0 0.0
    %733 = vmatpush1.xpose.msra.mxu0 0.0
    %734 = vmatprep.subr.mxu0 0.0
    %735 = vmatpush1.xpose.msra.mxu0 0.0
    %736 = vmatprep.subr.mxu0 0.0
    %737 = vmatpush1.xpose.msra.mxu0 0.0
    %738 = vmatprep.subr.mxu0 0.0
    %739 = vmatpush1.xpose.msra.mxu0 0.0
    %740 = vmatprep.subr.mxu0 0.0
    %741 = vmatpush1.xpose.msra.mxu0 0.0
    %742 = vmatprep.subr.mxu0 0.0
    %743 = vmatpush1.xpose.msra.mxu0 0.0
    %744 = vmatprep.subr.mxu0 0.0
    %745 = vmatpush1.xpose.msra.mxu0 0.0
    %746 = vmatprep.subr.mxu0 0.0
    %747 = vmatpush1.xpose.msra.mxu0 0.0
    %748 = vmatprep.subr.mxu0 0.0
    %749 = vmatpush1.xpose.msra.mxu0 0.0
    %750 = vmatprep.subr.mxu0 0.0
    %751 = vmatpush1.xpose.msra.mxu0 0.0
    %752 = vmatprep.subr.mxu0 0.0
    %753 = vmatpush1.xpose.msra.mxu0 0.0
    %754 = vmatprep.subr.mxu0 0.0
    %755 = vmatpush1.xpose.msra.mxu0 0.0
    %756 = vmatprep.subr.mxu0 0.0
    %757 = vmatpush1.xpose.msra.mxu0 0.0
    %758 = vmatprep.subr.mxu0 0.0
    %759 = vmatpush1.xpose.msra.mxu0 0.0
    %760 = vmatprep.subr.mxu0 0.0
    %761 = vmatpush1.xpose.msra.mxu0 0.0
    %762 = vmatprep.subr.mxu0 0.0
    %763 = vmatpush1.xpose.msra.mxu0 0.0
    %764 = vmatprep.subr.mxu0 0.0
    %765 = vmatpush1.xpose.msra.mxu0 0.0
    %766 = vmatprep.subr.mxu0 0.0
    %767 = vmatpush1.xpose.msra.mxu0 0.0
    %768 = vmatprep.subr.mxu0 0.0
    %769 = vmatpush1.xpose.msra.mxu0 0.0
    %770 = vmatprep.subr.mxu0 0.0
    %771 = vmatpush1.xpose.msra.mxu0 0.0
    %772 = vmatprep.subr.mxu0 0.0
    %773 = vmatpush1.xpose.msra.mxu0 0.0
    %774 = vmatprep.subr.mxu0 0.0
    %775 = vmatpush1.xpose.msra.mxu0 0.0
    %776 = vmatprep.subr.mxu0 0.0
    %777 = vmatpush1.xpose.msra.mxu0 0.0
    %778 = vmatprep.subr.mxu0 0.0
    %779 = vmatpush1.xpose.msra.mxu0 0.0
    %780 = vmatprep.subr.mxu0 0.0
    %781 = vmatpush1.xpose.msra.mxu0 0.0
    %782 = vmatprep.subr.mxu0 0.0
    %783 = vmatpush1.xpose.msra.mxu0 0.0
    %784 = vmatprep.subr.mxu0 0.0
    %785 = vmatpush1.xpose.msra.mxu0 0.0
    %786 = vmatprep.mubr.f32.mxu0 0.0
    %787 = vmatmul.mubr.f32.gmra.mrb[0].mxu0 %v720
    %v788 = vpop.f32.mrb[0].mxu0
    %v789 = vadd.f32 0.0, %v788
    %v790 = vpop.f32.mrb[0].mxu0
    %791 = vdwg.mxu0
    %v792 = vadd.f32 %v243, %v789
    %v793 = vtanh.pop %v792
    %v795 = vsel %vm256, %v793, 0
    %797 = vmatprep.subr.mxu0 0.0
    %798 = vmatpush1.xpose.msra.mxu0 %v261
    %799 = vmatprep.subr.mxu0 0.0
    %800 = vmatpush1.xpose.msra.mxu0 %v264
    %801 = vmatprep.subr.mxu0 0.0
    %802 = vmatpush1.xpose.msra.mxu0 %v267
    %803 = vmatprep.subr.mxu0 0.0
    %804 = vmatpush1.xpose.msra.mxu0 %v270
    %805 = vmatprep.subr.mxu0 0.0
    %806 = vmatpush1.xpose.msra.mxu0 0.0
    %807 = vmatprep.subr.mxu0 0.0
    %808 = vmatpush1.xpose.msra.mxu0 0.0
    %809 = vmatprep.subr.mxu0 0.0
    %810 = vmatpush1.xpose.msra.mxu0 0.0
    %811 = vmatprep.subr.mxu0 0.0
    %812 = vmatpush1.xpose.msra.mxu0 0.0
    %813 = vmatprep.subr.mxu0 0.0
    %814 = vmatpush1.xpose.msra.mxu0 0.0
    %815 = vmatprep.subr.mxu0 0.0
    %816 = vmatpush1.xpose.msra.mxu0 0.0
    %817 = vmatprep.subr.mxu0 0.0
    %818 = vmatpush1.xpose.msra.mxu0 0.0
    %819 = vmatprep.subr.mxu0 0.0
    %820 = vmatpush1.xpose.msra.mxu0 0.0
    %821 = vmatprep.subr.mxu0 0.0
    %822 = vmatpush1.xpose.msra.mxu0 0.0
    %823 = vmatprep.subr.mxu0 0.0
    %824 = vmatpush1.xpose.msra.mxu0 0.0
    %825 = vmatprep.subr.mxu0 0.0
    %826 = vmatpush1.xpose.msra.mxu0 0.0
    %827 = vmatprep.subr.mxu0 0.0
    %828 = vmatpush1.xpose.msra.mxu0 0.0
    %829 = vmatprep.subr.mxu0 0.0
    %830 = vmatpush1.xpose.msra.mxu0 0.0
    %831 = vmatprep.subr.mxu0 0.0
    %832 = vmatpush1.xpose.msra.mxu0 0.0
    %833 = vmatprep.subr.mxu0 0.0
    %834 = vmatpush1.xpose.msra.mxu0 0.0
    %835 = vmatprep.subr.mxu0 0.0
    %836 = vmatpush1.xpose.msra.mxu0 0.0
    %837 = vmatprep.subr.mxu0 0.0
    %838 = vmatpush1.xpose.msra.mxu0 0.0
    %839 = vmatprep.subr.mxu0 0.0
    %840 = vmatpush1.xpose.msra.mxu0 0.0
    %841 = vmatprep.subr.mxu0 0.0
    %842 = vmatpush1.xpose.msra.mxu0 0.0
    %843 = vmatprep.subr.mxu0 0.0
    %844 = vmatpush1.xpose.msra.mxu0 0.0
    %845 = vmatprep.subr.mxu0 0.0
    %846 = vmatpush1.xpose.msra.mxu0 0.0
    %847 = vmatprep.subr.mxu0 0.0
    %848 = vmatpush1.xpose.msra.mxu0 0.0
    %849 = vmatprep.subr.mxu0 0.0
    %850 = vmatpush1.xpose.msra.mxu0 0.0
    %851 = vmatprep.subr.mxu0 0.0
    %852 = vmatpush1.xpose.msra.mxu0 0.0
    %853 = vmatprep.subr.mxu0 0.0
    %854 = vmatpush1.xpose.msra.mxu0 0.0
    %855 = vmatprep.subr.mxu0 0.0
    %856 = vmatpush1.xpose.msra.mxu0 0.0
    %857 = vmatprep.subr.mxu0 0.0
    %858 = vmatpush1.xpose.msra.mxu0 0.0
    %859 = vmatprep.subr.mxu0 0.0
    %860 = vmatpush1.xpose.msra.mxu0 0.0
    %861 = vmatprep.mubr.f32.mxu0 0.0
    %862 = vmatmul.mubr.f32.gmra.mrb[0].mxu0 %v795
    %v863 = vpop.f32.mrb[0].mxu0
    %v864 = vadd.f32 0.0, %v863
    %v865 = vpop.f32.mrb[0].mxu0
    %866 = vdwg.mxu0
    %v867 = vadd.f32 %v248, %v864
    %v868 = vtanh.pop %v867
    %869 = vst.msk [vmem:[#allocation4] sm:$0xff] %vm256, %v868
    %870 = vst.msk [vmem:[#allocation2] sm:$0xff] %vm256, %v343
    %871 = vst.msk [vmem:[#allocation2 + $0x8] sm:$0xff] %vm256, %v418
    %872 = vst.msk [vmem:[#allocation2 + $0x10] sm:$0xff] %vm256, %v493
    %873 = vst.msk [vmem:[#allocation2 + $0x18] sm:$0xff] %vm256, %v568
    %874 = vst.msk [vmem:[#allocation2 + $0x20] sm:$0xff] %vm256, %v643
    %875 = vst.msk [vmem:[#allocation2 + $0x28] sm:$0xff] %vm256, %v718
    %876 = vst.msk [vmem:[#allocation2 + $0x30] sm:$0xff] %vm256, %v793
    %877 = vst.msk [vmem:[#allocation2 + $0x38] sm:$0xff] %vm256, %v868
    // Predicated region
    $region22: #{tpu_custom_call.1} parent=1 // pred_check
      _
    $region23: #{tpu_custom_call.1} parent=1 // pred_check_branch
      %879 = sbr.rel (0) target = $region25
    $region24: #{tpu_custom_call.1} parent=1 // pred_region
      %s881 = ssub.s32 1024, 1024
      %882 = vsyncadd [#allocation3], %s881
      %s883 = sshll.u32 [#allocation2], 4
      %s884 = int_to_ptr.vmem [resolvable:$true] %s883
      %889 = dma.vmem_to_hbm [thread:$0]  %s884, 1024, %s5, [#allocation3], 128, 128, 8
    $region25: #{tpu_custom_call.1} parent=1 // pred_fallthru
      _
    // Predicated region
    $region26: #{tpu_custom_call.1} parent=1 // pred_check
      _
    $region27: #{tpu_custom_call.1} parent=1 // pred_check_branch
      %891 = sbr.rel (0) target = $region29
    $region28: #{tpu_custom_call.1} parent=1 // pred_region
      %s893 = ssub.s32 128, 128
      %894 = vsyncadd [#allocation5], %s893
      %s896 = sshll.u32 [#allocation4], 4
      %s897 = int_to_ptr.vmem [resolvable:$true] %s896
      %899 = dma.vmem_to_hbm [thread:$0]  %s897, 128, %s6, [#allocation5]
    $region29: #{tpu_custom_call.1} parent=1 // pred_fallthru
      _
    // Predicated region
    $region30: #{tpu_custom_call.1} parent=1 // pred_check
      _
    $region31: #{tpu_custom_call.1} parent=1 // pred_check_branch
      %901 = sbr.rel (0) target = $region33
    $region32: #{tpu_custom_call.1} parent=1 // pred_region
      %902 = dma.done [#allocation3], 1024
    $region33: #{tpu_custom_call.1} parent=1 // pred_fallthru
      _
    // Predicated region
    $region34: #{tpu_custom_call.1} parent=1 // pred_check
      _
    $region35: #{tpu_custom_call.1} parent=1 // pred_check_branch
      %904 = sbr.rel (0) target = $region37
    $region36: #{tpu_custom_call.1} parent=1 // pred_region
      %905 = dma.done [#allocation5], 128
    $region37: #{tpu_custom_call.1} parent=1 // pred_fallthru
      _
    %906 = vsyncpa [#allocation3], 1
    %907 = vsyncpa [#allocation5], 1

</llo_original>
